<compile_context>
chip_gen: v5e
topology: v5e:2x2
jax: 0.10.0
libtpu: 0.0.40
codegen_flags: <defaults>
</compile_context>

<pallas_src>
import jax
import jax.numpy as jnp
from jax import lax
from jax.experimental import pallas as pl
from jax.experimental.pallas import tpu as pltpu

N_CATEGORIES = 3
_LANE = 128
_SUBLANE = 8
_NEG_INF = -1e30


def _round_up(n, m):
    return ((n + m - 1) // m) * m


# -----------------------------------------------------------------------------
# Phase 1 kernel: serial hidden recurrence.
#   h_t = (cx_t @ Wcx_h + b_i2h)  [precomputed, streamed]  +  h_{t-1} @ W_hh
# Only this matmul sits on the serial critical path.
# -----------------------------------------------------------------------------
def _recurrence_kernel(pcx_hid_ref, h0_ref, w_hh_ref, hprev_ref, hcur_ref,
                       carry_ref):
    tt = pcx_hid_ref.shape[0]

    @pl.when(pl.program_id(0) == 0)
    def _():
        carry_ref[...] = h0_ref[...].astype(carry_ref.dtype)

    h = carry_ref[...]
    # Inner time loop over the TT-step block, fully unrolled (TT is small and
    # static); the hidden value is carried in registers, not through VMEM.
    for s in range(tt):
        hprev_ref[s] = h                               # h_{t-1}: epilogue input
        h = (jnp.dot(h, w_hh_ref[...], preferred_element_type=jnp.float32)
             + pcx_hid_ref[s]).astype(carry_ref.dtype)
        hcur_ref[s] = h                                # h_t: epilogue input / result
    carry_ref[...] = h                                 # carry stays in VMEM (compute dtype)


# -----------------------------------------------------------------------------
# Phase 2 kernel: time-parallel o2o + log_softmax epilogue (batched over TT*Bp).
# -----------------------------------------------------------------------------
def _epilogue_kernel(hprev_ref, hcur_ref, pcx_out_ref, w_ho_ref, w_oh_ref,
                     w_oo_ref, b_o2o_ref, logp_ref):
    tt, bp, hp = hprev_ref.shape
    op = pcx_out_ref.shape[-1]
    n = tt * bp

    hprev = hprev_ref[...].reshape(n, hp)
    hcur = hcur_ref[...].reshape(n, hp)

    # out1 = i2o(combined) = pcx_out (streamed, includes b_i2o) + h_{t-1} @ W_h_out
    out1 = pcx_out_ref[...].reshape(n, op) + jnp.dot(
        hprev, w_ho_ref[...], preferred_element_type=jnp.float32)

    # out2 = o2o(cat(hidden, out1)); padded output columns receive -1e30 from
    # the bias (acts as the log_softmax column mask for free).
    out2 = (jnp.dot(hcur, w_oh_ref[...], preferred_element_type=jnp.float32)
            + jnp.dot(out1.astype(w_oo_ref.dtype), w_oo_ref[...],
                      preferred_element_type=jnp.float32)
            + b_o2o_ref[...])

    # dropout(p=0.1) in eval mode is the identity.
    # TODO(synk): train-mode dropout not modeled; would use pltpu.prng_seed /
    # pltpu.prng_random_bits.

    # Numerically stable log_softmax over the output dim (f32).
    m = jnp.max(out2, axis=-1, keepdims=True)
    sh = out2 - m
    lse = jnp.log(jnp.sum(jnp.exp(sh), axis=-1, keepdims=True))
    logp_ref[...] = (sh - lse).reshape(logp_ref.shape)


def prepare_params(params, input_size, hidden_size, output_size, compute_dtype):
    """One-time weight re-layout: split cx/hidden parts, pad, transpose, cast."""
    w_i2h, b_i2h, w_i2o, b_i2o, w_o2o, b_o2o = params
    H, O = hidden_size, output_size
    CX = N_CATEGORIES + input_size
    Hp = _round_up(H, _LANE)
    Op = _round_up(O, _LANE)

    # torch Linear weight is (out, in); "in" column order is [category | x | hidden].
    w_i2h_t = w_i2h.T                                  # (CX+H, H)
    w_i2o_t = w_i2o.T                                  # (CX+H, O)

    # [category|x] parts feed only the hoisted (time-independent) precompute,
    # so they stay unpadded.
    w_cx_h = w_i2h_t[:CX].astype(compute_dtype)        # (CX, H)
    w_cx_o = w_i2o_t[:CX].astype(compute_dtype)        # (CX, O)

    # Hidden-input parts (used inside the Pallas kernels), zero-padded to lanes.
    w_hh = jnp.zeros((Hp, Hp), jnp.float32).at[:H, :H].set(w_i2h_t[CX:])
    w_ho = jnp.zeros((Hp, Op), jnp.float32).at[:H, :O].set(w_i2o_t[CX:])

    # o2o on cat(hidden, out1): split into hidden-part and out1-part.
    w_o2o_t = w_o2o.T                                  # (H+O, O)
    w_oh = jnp.zeros((Hp, Op), jnp.float32).at[:H, :O].set(w_o2o_t[:H])
    w_oo = jnp.zeros((Op, Op), jnp.float32).at[:O, :O].set(w_o2o_t[H:])

    # o2o bias stays f32; -1e30 in the padded output columns doubles as the
    # log_softmax column mask (padded W_o2o columns are zero).
    b_o2o_p = jnp.full((1, Op), _NEG_INF, jnp.float32).at[0, :O].set(b_o2o)

    weights = dict(
        w_cx_h=w_cx_h, w_cx_o=w_cx_o, b_i2h=b_i2h, b_i2o=b_i2o,
        w_hh=w_hh.astype(compute_dtype), w_ho=w_ho.astype(compute_dtype),
        w_oh=w_oh.astype(compute_dtype), w_oo=w_oo.astype(compute_dtype),
        b_o2o=b_o2o_p)
    return weights, (Hp, Op)


def rnn_sequence_forward(category, xs, hidden0, params, *,
                         compute_dtype=jnp.bfloat16, time_block=16):
    """category: (B, n_cat), xs: (T, B, in), hidden0: (B, hid)
       -> (log_probs: (T, B, out), hidden_T: (B, hid))"""
    T, B, input_size = xs.shape
    H = hidden0.shape[1]
    O = params[2].shape[0]                             # w_i2o: (out, in)

    w, (Hp, Op) = prepare_params(params, input_size, H, O, compute_dtype)

    TT = min(time_block, T)                            # time steps per grid block
    Tp = _round_up(T, TT)
    Bp = _round_up(max(B, _SUBLANE), _SUBLANE)
    n_blocks = Tp // TT

    # ---- Phase 0 (XLA, off the serial path): hoisted [category|x] projections
    # for all T steps at once; biases folded in.
    cx = jnp.concatenate(
        [jnp.broadcast_to(category[None], (T, B, N_CATEGORIES)), xs],
        axis=-1).astype(compute_dtype)                 # (T, B, CX)
    pcx_hid = jnp.einsum('tbc,ch->tbh', cx, w['w_cx_h'],
                         preferred_element_type=jnp.float32,
                         precision=lax.Precision.HIGHEST) + w['b_i2h']
    pcx_out = jnp.einsum('tbc,co->tbo', cx, w['w_cx_o'],
                         preferred_element_type=jnp.float32,
                         precision=lax.Precision.HIGHEST) + w['b_i2o']

    pcx_hid_p = jnp.zeros((Tp, Bp, Hp), jnp.float32).at[:T, :B, :H].set(pcx_hid)
    pcx_out_p = jnp.zeros((Tp, Bp, Op), jnp.float32).at[:T, :B, :O].set(pcx_out)
    h0_p = jnp.zeros((Bp, Hp), jnp.float32).at[:B, :H].set(hidden0)

    const = lambda b: (0, 0)                           # weights / h0 stay VMEM-resident
    stream3 = lambda b: (b, 0, 0)                      # per-time-block streams

    # ---- Phase 1 (Pallas, serial): hidden recurrence, TT steps per grid block.
    hprev_seq, hcur_seq = pl.pallas_call(
        _recurrence_kernel,
        grid=(n_blocks,),
        in_specs=[
            pl.BlockSpec((TT, Bp, Hp), stream3),       # precomputed cx->hidden proj (f32)
            pl.BlockSpec((Bp, Hp), const),             # h0
            pl.BlockSpec((Hp, Hp), const),             # W_hh
        ],
        out_specs=(
            pl.BlockSpec((TT, Bp, Hp), stream3),       # h_{t-1} sequence
            pl.BlockSpec((TT, Bp, Hp), stream3),       # h_t sequence
        ),
        out_shape=(
            jax.ShapeDtypeStruct((Tp, Bp, Hp), compute_dtype),
            jax.ShapeDtypeStruct((Tp, Bp, Hp), compute_dtype),
        ),
        scratch_shapes=[pltpu.VMEM((Bp, Hp), compute_dtype)],  # hidden carry
        compiler_params=pltpu.CompilerParams(
            dimension_semantics=("arbitrary",),        # the recurrence over time is serial
        ),
    )(pcx_hid_p, h0_p, w['w_hh'])

    # ---- Phase 2 (Pallas, parallel over time blocks): o2o + log_softmax epilogue.
    logp_p = pl.pallas_call(
        _epilogue_kernel,
        grid=(n_blocks,),
        in_specs=[
            pl.BlockSpec((TT, Bp, Hp), stream3),       # h_{t-1}
            pl.BlockSpec((TT, Bp, Hp), stream3),       # h_t
            pl.BlockSpec((TT, Bp, Op), stream3),       # precomputed cx->out1 proj (f32)
            pl.BlockSpec((Hp, Op), const),             # W_h_out   (i2o hidden part)
            pl.BlockSpec((Hp, Op), const),             # W_o2o hidden part
            pl.BlockSpec((Op, Op), const),             # W_o2o out1 part
            pl.BlockSpec((1, Op), const),              # b_o2o (f32, with -1e30 column mask)
        ],
        out_specs=pl.BlockSpec((TT, Bp, Op), stream3),
        out_shape=jax.ShapeDtypeStruct((Tp, Bp, Op), jnp.float32),
        compiler_params=pltpu.CompilerParams(
            # No time dependence: shardable across both TensorCores on v7x.
            dimension_semantics=("parallel",),
        ),
    )(hprev_seq, hcur_seq, pcx_out_p, w['w_ho'], w['w_oh'], w['w_oo'], w['b_o2o'])

    log_probs = logp_p[:T, :B, :O]
    hidden_T = hcur_seq[T - 1, :B, :H].astype(jnp.float32)
    return log_probs, hidden_T


def rnn_forward(category, x, hidden, params, *, compute_dtype=jnp.bfloat16):
    """Single-step API matching the original module's forward()."""
    logp, h = rnn_sequence_forward(category, x[None], hidden, params,
                                   compute_dtype=compute_dtype)
    return logp[0], h


def init_params(key, input_size, hidden_size, output_size):
    """Deterministic init mirroring nn.Linear shapes (weight: (out, in), bias: (out,))."""
    c = N_CATEGORIES + input_size + hidden_size
    ks = jax.random.split(key, 6)

    def linear(kw, kb, fan_in, fan_out):
        bound = 1.0 / jnp.sqrt(fan_in)
        w = jax.random.uniform(kw, (fan_out, fan_in), jnp.float32, -bound, bound)
        b = jax.random.uniform(kb, (fan_out,), jnp.float32, -bound, bound)
        return w, b

    w_i2h, b_i2h = linear(ks[0], ks[1], c, hidden_size)
    w_i2o, b_i2o = linear(ks[2], ks[3], c, output_size)
    w_o2o, b_o2o = linear(ks[4], ks[5], hidden_size + output_size, output_size)
    return (w_i2h, b_i2h, w_i2o, b_i2o, w_o2o, b_o2o)


def rnn_reference(category, xs, hidden, params):
    """Pure-JAX reference of the original PyTorch module scanned over T steps."""
    w_i2h, b_i2h, w_i2o, b_i2o, w_o2o, b_o2o = params
    outs = []
    h = hidden
    for t in range(xs.shape[0]):
        comb = jnp.concatenate([category, xs[t], h], axis=1)
        h = comb @ w_i2h.T + b_i2h
        o1 = comb @ w_i2o.T + b_i2o
        o2 = jnp.concatenate([h, o1], axis=1) @ w_o2o.T + b_o2o
        outs.append(jax.nn.log_softmax(o2, axis=1))
    return jnp.stack(outs), h


if __name__ == "__main__":
    B, T = 2, 8
    input_size, hidden_size, output_size = 16, 32, 16

    key = jax.random.PRNGKey(0)
    k_par, k_cat, k_x, k_x2 = jax.random.split(key, 4)

    params = init_params(k_par, input_size, hidden_size, output_size)

    cat_idx = jax.random.randint(k_cat, (B,), 0, N_CATEGORIES)
    category = jax.nn.one_hot(cat_idx, N_CATEGORIES, dtype=jnp.float32)
    xs = jax.random.normal(k_x, (T, B, input_size), jnp.float32)
    hidden0 = jnp.zeros((B, hidden_size), jnp.float32)

    # f32 path: validate against the pure-JAX reference (loose tolerance:
    # MXU f32 matmuls use reduced-precision passes).
    fwd_f32 = jax.jit(lambda c, x, h, p: rnn_sequence_forward(
        c, x, h, p, compute_dtype=jnp.float32))
    logp32, h32 = fwd_f32(category, xs, hidden0, params)
    ref_logp, ref_h = rnn_reference(category, xs, hidden0, params)
    jax.block_until_ready((logp32, h32))
    assert logp32.shape == (T, B, output_size) and h32.shape == (B, hidden_size)
    assert jnp.allclose(logp32, ref_logp, atol=2e-2, rtol=2e-2)
    assert jnp.allclose(h32, ref_h, atol=2e-2, rtol=2e-2)

    # Multi-block + padded-T path (T not a multiple of the time block).
    T2 = 33
    xs2 = jax.random.normal(k_x2, (T2, B, input_size), jnp.float32)
    fwd_f32_blk = jax.jit(lambda c, x, h, p: rnn_sequence_forward(
        c, x, h, p, compute_dtype=jnp.float32, time_block=16))
    logp2, h2 = fwd_f32_blk(category, xs2, hidden0, params)
    ref_logp2, ref_h2 = rnn_reference(category, xs2, hidden0, params)
    jax.block_until_ready((logp2, h2))
    assert logp2.shape == (T2, B, output_size)
    assert jnp.allclose(logp2, ref_logp2, atol=2e-2, rtol=2e-2)
    assert jnp.allclose(h2, ref_h2, atol=2e-2, rtol=2e-2)

    # Single-step API parity (same kernels, T=1) vs step 0 of the sequence.
    lp1, h1 = rnn_forward(category, xs[0], hidden0, params, compute_dtype=jnp.float32)
    assert jnp.allclose(lp1, logp32[0], atol=1e-4)

    # Default bf16-weight path (v6e/v7x friendly): shape + normalization sanity.
    # TODO(synk): bf16 hidden-carry drift vs the f32 reference grows with T;
    # only the f32 path is validated element-wise against rnn_reference.
    fwd_bf16 = jax.jit(lambda c, x, h, p: rnn_sequence_forward(c, x, h, p))
    log_probs, new_hidden = fwd_bf16(category, xs, hidden0, params)
    jax.block_until_ready((log_probs, new_hidden))
    assert log_probs.shape == (T, B, output_size)
    assert new_hidden.shape == (B, hidden_size)
    # log_softmax sanity: rows sum (in prob space) to 1
    assert jnp.allclose(jnp.sum(jnp.exp(log_probs), axis=-1), 1.0, atol=1e-4)

    print("KERNEL_OK")
</pallas_src>

<mosaic_0001>
module attributes {stable_mosaic.version = 11 : i64} {
  func.func @_recurrence_kernel(%arg0: i32, %arg1: memref<8x8x128xf32, #tpu.memory_space<vmem>>, %arg2: memref<8x128xf32, #tpu.memory_space<vmem>>, %arg3: memref<128x128xf32, #tpu.memory_space<vmem>>, %arg4: memref<8x8x128xf32, #tpu.memory_space<vmem>>, %arg5: memref<8x8x128xf32, #tpu.memory_space<vmem>>, %arg6: memref<8x128xf32, #tpu.memory_space<vmem>>) attributes {dimension_semantics = [#tpu.dimension_semantics<arbitrary>], iteration_bounds = array<i64: 1>, scalar_prefetch = 0 : i64, scratch_operands = 1 : i64, tpu.core_type = #tpu.core_type<tc>, window_params = [{transform_indices = @transform_0, window_bounds = array<i64: 8, 8, 128>}, {pipeline_mode = #tpu.pipeline_mode<synchronous>, transform_indices = @transform_1, window_bounds = array<i64: 8, 128>}, {pipeline_mode = #tpu.pipeline_mode<synchronous>, transform_indices = @transform_2, window_bounds = array<i64: 128, 128>}, {transform_indices = @transform_3, window_bounds = array<i64: 8, 8, 128>}, {transform_indices = @transform_4, window_bounds = array<i64: 8, 8, 128>}]} {
    %c0_i32 = arith.constant 0 : i32
    %0 = arith.cmpi eq, %arg0, %c0_i32 : i32
    %1 = arith.extui %0 : i1 to i32
    %c0_i32_0 = arith.constant 0 : i32
    %2 = arith.cmpi ne, %1, %c0_i32_0 : i32
    scf.if %2 {
      %c0_92 = arith.constant 0 : index
      %c0_93 = arith.constant 0 : index
      %93 = vector.load %arg2[%c0_92, %c0_93] : memref<8x128xf32, #tpu.memory_space<vmem>>, vector<8x128xf32>
      %c0_94 = arith.constant 0 : index
      %c0_95 = arith.constant 0 : index
      %94 = vector.load %arg6[%c0_94, %c0_95] : memref<8x128xf32, #tpu.memory_space<vmem>>, vector<8x128xf32>
      tpu.vector_store %arg6[%c0_94, %c0_95], %93 {strides = array<i32>} : memref<8x128xf32, #tpu.memory_space<vmem>>, vector<8x128xf32>,
    } else {
    }
    %c0 = arith.constant 0 : index
    %c0_1 = arith.constant 0 : index
    %3 = vector.load %arg6[%c0, %c0_1] : memref<8x128xf32, #tpu.memory_space<vmem>>, vector<8x128xf32>
    %c0_2 = arith.constant 0 : index
    %c0_3 = arith.constant 0 : index
    %c0_4 = arith.constant 0 : index
    %4 = vector.load %arg4[%c0_2, %c0_3, %c0_4] : memref<8x8x128xf32, #tpu.memory_space<vmem>>, vector<1x8x128xf32>
    %5 = vector.shape_cast %4 : vector<1x8x128xf32> to vector<8x128xf32>
    %6 = vector.shape_cast %3 : vector<8x128xf32> to vector<1x8x128xf32>
    tpu.vector_store %arg4[%c0_2, %c0_3, %c0_4], %6 {strides = array<i32>} : memref<8x8x128xf32, #tpu.memory_space<vmem>>, vector<1x8x128xf32>,
    %c0_5 = arith.constant 0 : index
    %c0_6 = arith.constant 0 : index
    %7 = vector.load %arg3[%c0_5, %c0_6] : memref<128x128xf32, #tpu.memory_space<vmem>>, vector<128x128xf32>
    %cst = arith.constant dense<0.000000e+00> : vector<8x128xf32>
    %8 = tpu.matmul %3, %7, %cst {dimension_numbers = #tpu.dot_dimension_numbers<[1], [0], [0], [1], [0, 0, 1, 1], [], []>} : vector<8x128xf32>, vector<128x128xf32>, vector<8x128xf32> -> vector<8x128xf32>
    %c0_7 = arith.constant 0 : index
    %c0_8 = arith.constant 0 : index
    %c0_9 = arith.constant 0 : index
    %9 = vector.load %arg1[%c0_7, %c0_8, %c0_9] : memref<8x8x128xf32, #tpu.memory_space<vmem>>, vector<1x8x128xf32>
    %10 = vector.shape_cast %9 : vector<1x8x128xf32> to vector<8x128xf32>
    %11 = arith.addf %8, %10 : vector<8x128xf32>
    %c0_10 = arith.constant 0 : index
    %c0_11 = arith.constant 0 : index
    %c0_12 = arith.constant 0 : index
    %12 = vector.load %arg5[%c0_10, %c0_11, %c0_12] : memref<8x8x128xf32, #tpu.memory_space<vmem>>, vector<1x8x128xf32>
    %13 = vector.shape_cast %12 : vector<1x8x128xf32> to vector<8x128xf32>
    %14 = vector.shape_cast %11 : vector<8x128xf32> to vector<1x8x128xf32>
    tpu.vector_store %arg5[%c0_10, %c0_11, %c0_12], %14 {strides = array<i32>} : memref<8x8x128xf32, #tpu.memory_space<vmem>>, vector<1x8x128xf32>,
    %c1 = arith.constant 1 : index
    %c0_13 = arith.constant 0 : index
    %c0_14 = arith.constant 0 : index
    %15 = vector.load %arg4[%c1, %c0_13, %c0_14] : memref<8x8x128xf32, #tpu.memory_space<vmem>>, vector<1x8x128xf32>
    %16 = vector.shape_cast %15 : vector<1x8x128xf32> to vector<8x128xf32>
    %17 = vector.shape_cast %11 : vector<8x128xf32> to vector<1x8x128xf32>
    tpu.vector_store %arg4[%c1, %c0_13, %c0_14], %17 {strides = array<i32>} : memref<8x8x128xf32, #tpu.memory_space<vmem>>, vector<1x8x128xf32>,
    %c0_15 = arith.constant 0 : index
    %c0_16 = arith.constant 0 : index
    %18 = vector.load %arg3[%c0_15, %c0_16] : memref<128x128xf32, #tpu.memory_space<vmem>>, vector<128x128xf32>
    %cst_17 = arith.constant dense<0.000000e+00> : vector<8x128xf32>
    %19 = tpu.matmul %11, %18, %cst_17 {dimension_numbers = #tpu.dot_dimension_numbers<[1], [0], [0], [1], [0, 0, 1, 1], [], []>} : vector<8x128xf32>, vector<128x128xf32>, vector<8x128xf32> -> vector<8x128xf32>
    %c1_18 = arith.constant 1 : index
    %c0_19 = arith.constant 0 : index
    %c0_20 = arith.constant 0 : index
    %20 = vector.load %arg1[%c1_18, %c0_19, %c0_20] : memref<8x8x128xf32, #tpu.memory_space<vmem>>, vector<1x8x128xf32>
    %21 = vector.shape_cast %20 : vector<1x8x128xf32> to vector<8x128xf32>
    %22 = arith.addf %19, %21 : vector<8x128xf32>
    %c1_21 = arith.constant 1 : index
    %c0_22 = arith.constant 0 : index
    %c0_23 = arith.constant 0 : index
    %23 = vector.load %arg5[%c1_21, %c0_22, %c0_23] : memref<8x8x128xf32, #tpu.memory_space<vmem>>, vector<1x8x128xf32>
    %24 = vector.shape_cast %23 : vector<1x8x128xf32> to vector<8x128xf32>
    %25 = vector.shape_cast %22 : vector<8x128xf32> to vector<1x8x128xf32>
    tpu.vector_store %arg5[%c1_21, %c0_22, %c0_23], %25 {strides = array<i32>} : memref<8x8x128xf32, #tpu.memory_space<vmem>>, vector<1x8x128xf32>,
    %c2 = arith.constant 2 : index
    %c0_24 = arith.constant 0 : index
    %c0_25 = arith.constant 0 : index
    %26 = vector.load %arg4[%c2, %c0_24, %c0_25] : memref<8x8x128xf32, #tpu.memory_space<vmem>>, vector<1x8x128xf32>
    %27 = vector.shape_cast %26 : vector<1x8x128xf32> to vector<8x128xf32>
    %28 = vector.shape_cast %22 : vector<8x128xf32> to vector<1x8x128xf32>
    tpu.vector_store %arg4[%c2, %c0_24, %c0_25], %28 {strides = array<i32>} : memref<8x8x128xf32, #tpu.memory_space<vmem>>, vector<1x8x128xf32>,
    %c0_26 = arith.constant 0 : index
    %c0_27 = arith.constant 0 : index
    %29 = vector.load %arg3[%c0_26, %c0_27] : memref<128x128xf32, #tpu.memory_space<vmem>>, vector<128x128xf32>
    %cst_28 = arith.constant dense<0.000000e+00> : vector<8x128xf32>
    %30 = tpu.matmul %22, %29, %cst_28 {dimension_numbers = #tpu.dot_dimension_numbers<[1], [0], [0], [1], [0, 0, 1, 1], [], []>} : vector<8x128xf32>, vector<128x128xf32>, vector<8x128xf32> -> vector<8x128xf32>
    %c2_29 = arith.constant 2 : index
    %c0_30 = arith.constant 0 : index
    %c0_31 = arith.constant 0 : index
    %31 = vector.load %arg1[%c2_29, %c0_30, %c0_31] : memref<8x8x128xf32, #tpu.memory_space<vmem>>, vector<1x8x128xf32>
    %32 = vector.shape_cast %31 : vector<1x8x128xf32> to vector<8x128xf32>
    %33 = arith.addf %30, %32 : vector<8x128xf32>
    %c2_32 = arith.constant 2 : index
    %c0_33 = arith.constant 0 : index
    %c0_34 = arith.constant 0 : index
    %34 = vector.load %arg5[%c2_32, %c0_33, %c0_34] : memref<8x8x128xf32, #tpu.memory_space<vmem>>, vector<1x8x128xf32>
    %35 = vector.shape_cast %34 : vector<1x8x128xf32> to vector<8x128xf32>
    %36 = vector.shape_cast %33 : vector<8x128xf32> to vector<1x8x128xf32>
    tpu.vector_store %arg5[%c2_32, %c0_33, %c0_34], %36 {strides = array<i32>} : memref<8x8x128xf32, #tpu.memory_space<vmem>>, vector<1x8x128xf32>,
    %c3 = arith.constant 3 : index
    %c0_35 = arith.constant 0 : index
    %c0_36 = arith.constant 0 : index
    %37 = vector.load %arg4[%c3, %c0_35, %c0_36] : memref<8x8x128xf32, #tpu.memory_space<vmem>>, vector<1x8x128xf32>
    %38 = vector.shape_cast %37 : vector<1x8x128xf32> to vector<8x128xf32>
    %39 = vector.shape_cast %33 : vector<8x128xf32> to vector<1x8x128xf32>
    tpu.vector_store %arg4[%c3, %c0_35, %c0_36], %39 {strides = array<i32>} : memref<8x8x128xf32, #tpu.memory_space<vmem>>, vector<1x8x128xf32>,
    %c0_37 = arith.constant 0 : index
    %c0_38 = arith.constant 0 : index
    %40 = vector.load %arg3[%c0_37, %c0_38] : memref<128x128xf32, #tpu.memory_space<vmem>>, vector<128x128xf32>
    %cst_39 = arith.constant dense<0.000000e+00> : vector<8x128xf32>
    %41 = tpu.matmul %33, %40, %cst_39 {dimension_numbers = #tpu.dot_dimension_numbers<[1], [0], [0], [1], [0, 0, 1, 1], [], []>} : vector<8x128xf32>, vector<128x128xf32>, vector<8x128xf32> -> vector<8x128xf32>
    %c3_40 = arith.constant 3 : index
    %c0_41 = arith.constant 0 : index
    %c0_42 = arith.constant 0 : index
    %42 = vector.load %arg1[%c3_40, %c0_41, %c0_42] : memref<8x8x128xf32, #tpu.memory_space<vmem>>, vector<1x8x128xf32>
    %43 = vector.shape_cast %42 : vector<1x8x128xf32> to vector<8x128xf32>
    %44 = arith.addf %41, %43 : vector<8x128xf32>
    %c3_43 = arith.constant 3 : index
    %c0_44 = arith.constant 0 : index
    %c0_45 = arith.constant 0 : index
    %45 = vector.load %arg5[%c3_43, %c0_44, %c0_45] : memref<8x8x128xf32, #tpu.memory_space<vmem>>, vector<1x8x128xf32>
    %46 = vector.shape_cast %45 : vector<1x8x128xf32> to vector<8x128xf32>
    %47 = vector.shape_cast %44 : vector<8x128xf32> to vector<1x8x128xf32>
    tpu.vector_store %arg5[%c3_43, %c0_44, %c0_45], %47 {strides = array<i32>} : memref<8x8x128xf32, #tpu.memory_space<vmem>>, vector<1x8x128xf32>,
    %c4 = arith.constant 4 : index
    %c0_46 = arith.constant 0 : index
    %c0_47 = arith.constant 0 : index
    %48 = vector.load %arg4[%c4, %c0_46, %c0_47] : memref<8x8x128xf32, #tpu.memory_space<vmem>>, vector<1x8x128xf32>
    %49 = vector.shape_cast %48 : vector<1x8x128xf32> to vector<8x128xf32>
    %50 = vector.shape_cast %44 : vector<8x128xf32> to vector<1x8x128xf32>
    tpu.vector_store %arg4[%c4, %c0_46, %c0_47], %50 {strides = array<i32>} : memref<8x8x128xf32, #tpu.memory_space<vmem>>, vector<1x8x128xf32>,
    %c0_48 = arith.constant 0 : index
    %c0_49 = arith.constant 0 : index
    %51 = vector.load %arg3[%c0_48, %c0_49] : memref<128x128xf32, #tpu.memory_space<vmem>>, vector<128x128xf32>
    %cst_50 = arith.constant dense<0.000000e+00> : vector<8x128xf32>
    %52 = tpu.matmul %44, %51, %cst_50 {dimension_numbers = #tpu.dot_dimension_numbers<[1], [0], [0], [1], [0, 0, 1, 1], [], []>} : vector<8x128xf32>, vector<128x128xf32>, vector<8x128xf32> -> vector<8x128xf32>
    %c4_51 = arith.constant 4 : index
    %c0_52 = arith.constant 0 : index
    %c0_53 = arith.constant 0 : index
    %53 = vector.load %arg1[%c4_51, %c0_52, %c0_53] : memref<8x8x128xf32, #tpu.memory_space<vmem>>, vector<1x8x128xf32>
    %54 = vector.shape_cast %53 : vector<1x8x128xf32> to vector<8x128xf32>
    %55 = arith.addf %52, %54 : vector<8x128xf32>
    %c4_54 = arith.constant 4 : index
    %c0_55 = arith.constant 0 : index
    %c0_56 = arith.constant 0 : index
    %56 = vector.load %arg5[%c4_54, %c0_55, %c0_56] : memref<8x8x128xf32, #tpu.memory_space<vmem>>, vector<1x8x128xf32>
    %57 = vector.shape_cast %56 : vector<1x8x128xf32> to vector<8x128xf32>
    %58 = vector.shape_cast %55 : vector<8x128xf32> to vector<1x8x128xf32>
    tpu.vector_store %arg5[%c4_54, %c0_55, %c0_56], %58 {strides = array<i32>} : memref<8x8x128xf32, #tpu.memory_space<vmem>>, vector<1x8x128xf32>,
    %c5 = arith.constant 5 : index
    %c0_57 = arith.constant 0 : index
    %c0_58 = arith.constant 0 : index
    %59 = vector.load %arg4[%c5, %c0_57, %c0_58] : memref<8x8x128xf32, #tpu.memory_space<vmem>>, vector<1x8x128xf32>
    %60 = vector.shape_cast %59 : vector<1x8x128xf32> to vector<8x128xf32>
    %61 = vector.shape_cast %55 : vector<8x128xf32> to vector<1x8x128xf32>
    tpu.vector_store %arg4[%c5, %c0_57, %c0_58], %61 {strides = array<i32>} : memref<8x8x128xf32, #tpu.memory_space<vmem>>, vector<1x8x128xf32>,
    %c0_59 = arith.constant 0 : index
    %c0_60 = arith.constant 0 : index
    %62 = vector.load %arg3[%c0_59, %c0_60] : memref<128x128xf32, #tpu.memory_space<vmem>>, vector<128x128xf32>
    %cst_61 = arith.constant dense<0.000000e+00> : vector<8x128xf32>
    %63 = tpu.matmul %55, %62, %cst_61 {dimension_numbers = #tpu.dot_dimension_numbers<[1], [0], [0], [1], [0, 0, 1, 1], [], []>} : vector<8x128xf32>, vector<128x128xf32>, vector<8x128xf32> -> vector<8x128xf32>
    %c5_62 = arith.constant 5 : index
    %c0_63 = arith.constant 0 : index
    %c0_64 = arith.constant 0 : index
    %64 = vector.load %arg1[%c5_62, %c0_63, %c0_64] : memref<8x8x128xf32, #tpu.memory_space<vmem>>, vector<1x8x128xf32>
    %65 = vector.shape_cast %64 : vector<1x8x128xf32> to vector<8x128xf32>
    %66 = arith.addf %63, %65 : vector<8x128xf32>
    %c5_65 = arith.constant 5 : index
    %c0_66 = arith.constant 0 : index
    %c0_67 = arith.constant 0 : index
    %67 = vector.load %arg5[%c5_65, %c0_66, %c0_67] : memref<8x8x128xf32, #tpu.memory_space<vmem>>, vector<1x8x128xf32>
    %68 = vector.shape_cast %67 : vector<1x8x128xf32> to vector<8x128xf32>
    %69 = vector.shape_cast %66 : vector<8x128xf32> to vector<1x8x128xf32>
    tpu.vector_store %arg5[%c5_65, %c0_66, %c0_67], %69 {strides = array<i32>} : memref<8x8x128xf32, #tpu.memory_space<vmem>>, vector<1x8x128xf32>,
    %c6 = arith.constant 6 : index
    %c0_68 = arith.constant 0 : index
    %c0_69 = arith.constant 0 : index
    %70 = vector.load %arg4[%c6, %c0_68, %c0_69] : memref<8x8x128xf32, #tpu.memory_space<vmem>>, vector<1x8x128xf32>
    %71 = vector.shape_cast %70 : vector<1x8x128xf32> to vector<8x128xf32>
    %72 = vector.shape_cast %66 : vector<8x128xf32> to vector<1x8x128xf32>
    tpu.vector_store %arg4[%c6, %c0_68, %c0_69], %72 {strides = array<i32>} : memref<8x8x128xf32, #tpu.memory_space<vmem>>, vector<1x8x128xf32>,
    %c0_70 = arith.constant 0 : index
    %c0_71 = arith.constant 0 : index
    %73 = vector.load %arg3[%c0_70, %c0_71] : memref<128x128xf32, #tpu.memory_space<vmem>>, vector<128x128xf32>
    %cst_72 = arith.constant dense<0.000000e+00> : vector<8x128xf32>
    %74 = tpu.matmul %66, %73, %cst_72 {dimension_numbers = #tpu.dot_dimension_numbers<[1], [0], [0], [1], [0, 0, 1, 1], [], []>} : vector<8x128xf32>, vector<128x128xf32>, vector<8x128xf32> -> vector<8x128xf32>
    %c6_73 = arith.constant 6 : index
    %c0_74 = arith.constant 0 : index
    %c0_75 = arith.constant 0 : index
    %75 = vector.load %arg1[%c6_73, %c0_74, %c0_75] : memref<8x8x128xf32, #tpu.memory_space<vmem>>, vector<1x8x128xf32>
    %76 = vector.shape_cast %75 : vector<1x8x128xf32> to vector<8x128xf32>
    %77 = arith.addf %74, %76 : vector<8x128xf32>
    %c6_76 = arith.constant 6 : index
    %c0_77 = arith.constant 0 : index
    %c0_78 = arith.constant 0 : index
    %78 = vector.load %arg5[%c6_76, %c0_77, %c0_78] : memref<8x8x128xf32, #tpu.memory_space<vmem>>, vector<1x8x128xf32>
    %79 = vector.shape_cast %78 : vector<1x8x128xf32> to vector<8x128xf32>
    %80 = vector.shape_cast %77 : vector<8x128xf32> to vector<1x8x128xf32>
    tpu.vector_store %arg5[%c6_76, %c0_77, %c0_78], %80 {strides = array<i32>} : memref<8x8x128xf32, #tpu.memory_space<vmem>>, vector<1x8x128xf32>,
    %c7 = arith.constant 7 : index
    %c0_79 = arith.constant 0 : index
    %c0_80 = arith.constant 0 : index
    %81 = vector.load %arg4[%c7, %c0_79, %c0_80] : memref<8x8x128xf32, #tpu.memory_space<vmem>>, vector<1x8x128xf32>
    %82 = vector.shape_cast %81 : vector<1x8x128xf32> to vector<8x128xf32>
    %83 = vector.shape_cast %77 : vector<8x128xf32> to vector<1x8x128xf32>
    tpu.vector_store %arg4[%c7, %c0_79, %c0_80], %83 {strides = array<i32>} : memref<8x8x128xf32, #tpu.memory_space<vmem>>, vector<1x8x128xf32>,
    %c0_81 = arith.constant 0 : index
    %c0_82 = arith.constant 0 : index
    %84 = vector.load %arg3[%c0_81, %c0_82] : memref<128x128xf32, #tpu.memory_space<vmem>>, vector<128x128xf32>
    %cst_83 = arith.constant dense<0.000000e+00> : vector<8x128xf32>
    %85 = tpu.matmul %77, %84, %cst_83 {dimension_numbers = #tpu.dot_dimension_numbers<[1], [0], [0], [1], [0, 0, 1, 1], [], []>} : vector<8x128xf32>, vector<128x128xf32>, vector<8x128xf32> -> vector<8x128xf32>
    %c7_84 = arith.constant 7 : index
    %c0_85 = arith.constant 0 : index
    %c0_86 = arith.constant 0 : index
    %86 = vector.load %arg1[%c7_84, %c0_85, %c0_86] : memref<8x8x128xf32, #tpu.memory_space<vmem>>, vector<1x8x128xf32>
    %87 = vector.shape_cast %86 : vector<1x8x128xf32> to vector<8x128xf32>
    %88 = arith.addf %85, %87 : vector<8x128xf32>
    %c7_87 = arith.constant 7 : index
    %c0_88 = arith.constant 0 : index
    %c0_89 = arith.constant 0 : index
    %89 = vector.load %arg5[%c7_87, %c0_88, %c0_89] : memref<8x8x128xf32, #tpu.memory_space<vmem>>, vector<1x8x128xf32>
    %90 = vector.shape_cast %89 : vector<1x8x128xf32> to vector<8x128xf32>
    %91 = vector.shape_cast %88 : vector<8x128xf32> to vector<1x8x128xf32>
    tpu.vector_store %arg5[%c7_87, %c0_88, %c0_89], %91 {strides = array<i32>} : memref<8x8x128xf32, #tpu.memory_space<vmem>>, vector<1x8x128xf32>,
    %c0_90 = arith.constant 0 : index
    %c0_91 = arith.constant 0 : index
    %92 = vector.load %arg6[%c0_90, %c0_91] : memref<8x128xf32, #tpu.memory_space<vmem>>, vector<8x128xf32>
    tpu.vector_store %arg6[%c0_90, %c0_91], %88 {strides = array<i32>} : memref<8x128xf32, #tpu.memory_space<vmem>>, vector<8x128xf32>,
    return
  }
  func.func @transform_0(%arg0: i32) -> (i32, i32, i32) {
    %c0_i32 = arith.constant 0 : i32
    %c0_i32_0 = arith.constant 0 : i32
    %c0_i32_1 = arith.constant 0 : i32
    return %arg0, %c0_i32, %c0_i32_0 : i32, i32, i32
  }
  func.func @transform_1(%arg0: i32) -> (i32, i32) {
    %c0_i32 = arith.constant 0 : i32
    %c0_i32_0 = arith.constant 0 : i32
    %c0_i32_1 = arith.constant 0 : i32
    return %c0_i32, %c0_i32_0 : i32, i32
  }
  func.func @transform_2(%arg0: i32) -> (i32, i32) {
    %c0_i32 = arith.constant 0 : i32
    %c0_i32_0 = arith.constant 0 : i32
    %c0_i32_1 = arith.constant 0 : i32
    return %c0_i32, %c0_i32_0 : i32, i32
  }
  func.func @transform_3(%arg0: i32) -> (i32, i32, i32) {
    %c0_i32 = arith.constant 0 : i32
    %c0_i32_0 = arith.constant 0 : i32
    %c0_i32_1 = arith.constant 0 : i32
    return %arg0, %c0_i32, %c0_i32_0 : i32, i32, i32
  }
  func.func @transform_4(%arg0: i32) -> (i32, i32, i32) {
    %c0_i32 = arith.constant 0 : i32
    %c0_i32_0 = arith.constant 0 : i32
    %c0_i32_1 = arith.constant 0 : i32
    return %arg0, %c0_i32, %c0_i32_0 : i32, i32, i32
  }
}

module attributes {stable_mosaic.version = 11 : i64} {
  func.func @_epilogue_kernel(%arg0: i32, %arg1: memref<8x8x128xf32, #tpu.memory_space<vmem>>, %arg2: memref<8x8x128xf32, #tpu.memory_space<vmem>>, %arg3: memref<8x8x128xf32, #tpu.memory_space<vmem>>, %arg4: memref<128x128xf32, #tpu.memory_space<vmem>>, %arg5: memref<128x128xf32, #tpu.memory_space<vmem>>, %arg6: memref<128x128xf32, #tpu.memory_space<vmem>>, %arg7: memref<1x128xf32, #tpu.memory_space<vmem>>, %arg8: memref<8x8x128xf32, #tpu.memory_space<vmem>>) attributes {dimension_semantics = [#tpu.dimension_semantics<parallel>], iteration_bounds = array<i64: 1>, scalar_prefetch = 0 : i64, scratch_operands = 0 : i64, tpu.core_type = #tpu.core_type<tc>, window_params = [{transform_indices = @transform_0, window_bounds = array<i64: 8, 8, 128>}, {transform_indices = @transform_1, window_bounds = array<i64: 8, 8, 128>}, {transform_indices = @transform_2, window_bounds = array<i64: 8, 8, 128>}, {pipeline_mode = #tpu.pipeline_mode<synchronous>, transform_indices = @transform_3, window_bounds = array<i64: 128, 128>}, {pipeline_mode = #tpu.pipeline_mode<synchronous>, transform_indices = @transform_4, window_bounds = array<i64: 128, 128>}, {pipeline_mode = #tpu.pipeline_mode<synchronous>, transform_indices = @transform_5, window_bounds = array<i64: 128, 128>}, {pipeline_mode = #tpu.pipeline_mode<synchronous>, transform_indices = @transform_6, window_bounds = array<i64: 1, 128>}, {transform_indices = @transform_7, window_bounds = array<i64: 8, 8, 128>}]} {
    %c0 = arith.constant 0 : index
    %c0_0 = arith.constant 0 : index
    %c0_1 = arith.constant 0 : index
    %0 = vector.load %arg1[%c0, %c0_0, %c0_1] : memref<8x8x128xf32, #tpu.memory_space<vmem>>, vector<8x8x128xf32>
    %1 = vector.shape_cast %0 : vector<8x8x128xf32> to vector<64x128xf32>
    %c0_2 = arith.constant 0 : index
    %c0_3 = arith.constant 0 : index
    %c0_4 = arith.constant 0 : index
    %2 = vector.load %arg2[%c0_2, %c0_3, %c0_4] : memref<8x8x128xf32, #tpu.memory_space<vmem>>, vector<8x8x128xf32>
    %3 = vector.shape_cast %2 : vector<8x8x128xf32> to vector<64x128xf32>
    %c0_5 = arith.constant 0 : index
    %c0_6 = arith.constant 0 : index
    %c0_7 = arith.constant 0 : index
    %4 = vector.load %arg3[%c0_5, %c0_6, %c0_7] : memref<8x8x128xf32, #tpu.memory_space<vmem>>, vector<8x8x128xf32>
    %5 = vector.shape_cast %4 : vector<8x8x128xf32> to vector<64x128xf32>
    %c0_8 = arith.constant 0 : index
    %c0_9 = arith.constant 0 : index
    %6 = vector.load %arg4[%c0_8, %c0_9] : memref<128x128xf32, #tpu.memory_space<vmem>>, vector<128x128xf32>
    %cst = arith.constant dense<0.000000e+00> : vector<64x128xf32>
    %7 = tpu.matmul %1, %6, %cst {dimension_numbers = #tpu.dot_dimension_numbers<[1], [0], [0], [1], [0, 0, 1, 1], [], []>} : vector<64x128xf32>, vector<128x128xf32>, vector<64x128xf32> -> vector<64x128xf32>
    %8 = arith.addf %5, %7 : vector<64x128xf32>
    %c0_10 = arith.constant 0 : index
    %c0_11 = arith.constant 0 : index
    %9 = vector.load %arg5[%c0_10, %c0_11] : memref<128x128xf32, #tpu.memory_space<vmem>>, vector<128x128xf32>
    %cst_12 = arith.constant dense<0.000000e+00> : vector<64x128xf32>
    %10 = tpu.matmul %3, %9, %cst_12 {dimension_numbers = #tpu.dot_dimension_numbers<[1], [0], [0], [1], [0, 0, 1, 1], [], []>} : vector<64x128xf32>, vector<128x128xf32>, vector<64x128xf32> -> vector<64x128xf32>
    %c0_13 = arith.constant 0 : index
    %c0_14 = arith.constant 0 : index
    %11 = vector.load %arg6[%c0_13, %c0_14] : memref<128x128xf32, #tpu.memory_space<vmem>>, vector<128x128xf32>
    %cst_15 = arith.constant dense<0.000000e+00> : vector<64x128xf32>
    %12 = tpu.matmul %8, %11, %cst_15 {dimension_numbers = #tpu.dot_dimension_numbers<[1], [0], [0], [1], [0, 0, 1, 1], [], []>} : vector<64x128xf32>, vector<128x128xf32>, vector<64x128xf32> -> vector<64x128xf32>
    %13 = arith.addf %10, %12 : vector<64x128xf32>
    %c0_16 = arith.constant 0 : index
    %c0_17 = arith.constant 0 : index
    %14 = vector.load %arg7[%c0_16, %c0_17] : memref<1x128xf32, #tpu.memory_space<vmem>>, vector<1x128xf32>
    %15 = vector.broadcast %14 : vector<1x128xf32> to vector<64x128xf32>
    %16 = arith.addf %13, %15 : vector<64x128xf32>
    %cst_18 = arith.constant dense<0xFF800000> : vector<64xf32>
    %17 = vector.multi_reduction <maximumf>, %16, %cst_18 [1] : vector<64x128xf32> to vector<64xf32>
    %18 = vector.shape_cast %17 : vector<64xf32> to vector<64x1xf32>
    %19 = vector.broadcast %18 : vector<64x1xf32> to vector<64x128xf32>
    %20 = arith.subf %16, %19 : vector<64x128xf32>
    %21 = math.exp %20 : vector<64x128xf32>
    %cst_19 = arith.constant dense<0.000000e+00> : vector<64xf32>
    %22 = vector.multi_reduction <add>, %21, %cst_19 [1] : vector<64x128xf32> to vector<64xf32>
    %23 = vector.shape_cast %22 : vector<64xf32> to vector<64x1xf32>
    %24 = math.log %23 : vector<64x1xf32>
    %25 = vector.broadcast %24 : vector<64x1xf32> to vector<64x128xf32>
    %26 = arith.subf %20, %25 : vector<64x128xf32>
    %27 = vector.shape_cast %26 : vector<64x128xf32> to vector<8x8x128xf32>
    %c0_20 = arith.constant 0 : index
    %c0_21 = arith.constant 0 : index
    %c0_22 = arith.constant 0 : index
    %28 = vector.load %arg8[%c0_20, %c0_21, %c0_22] : memref<8x8x128xf32, #tpu.memory_space<vmem>>, vector<8x8x128xf32>
    tpu.vector_store %arg8[%c0_20, %c0_21, %c0_22], %27 {strides = array<i32>} : memref<8x8x128xf32, #tpu.memory_space<vmem>>, vector<8x8x128xf32>,
    return
  }
  func.func @transform_0(%arg0: i32) -> (i32, i32, i32) {
    %c0_i32 = arith.constant 0 : i32
    %c0_i32_0 = arith.constant 0 : i32
    %c0_i32_1 = arith.constant 0 : i32
    return %arg0, %c0_i32, %c0_i32_0 : i32, i32, i32
  }
  func.func @transform_1(%arg0: i32) -> (i32, i32, i32) {
    %c0_i32 = arith.constant 0 : i32
    %c0_i32_0 = arith.constant 0 : i32
    %c0_i32_1 = arith.constant 0 : i32
    return %arg0, %c0_i32, %c0_i32_0 : i32, i32, i32
  }
  func.func @transform_2(%arg0: i32) -> (i32, i32, i32) {
    %c0_i32 = arith.constant 0 : i32
    %c0_i32_0 = arith.constant 0 : i32
    %c0_i32_1 = arith.constant 0 : i32
    return %arg0, %c0_i32, %c0_i32_0 : i32, i32, i32
  }
  func.func @transform_3(%arg0: i32) -> (i32, i32) {
    %c0_i32 = arith.constant 0 : i32
    %c0_i32_0 = arith.constant 0 : i32
    %c0_i32_1 = arith.constant 0 : i32
    return %c0_i32, %c0_i32_0 : i32, i32
  }
  func.func @transform_4(%arg0: i32) -> (i32, i32) {
    %c0_i32 = arith.constant 0 : i32
    %c0_i32_0 = arith.constant 0 : i32
    %c0_i32_1 = arith.constant 0 : i32
    return %c0_i32, %c0_i32_0 : i32, i32
  }
  func.func @transform_5(%arg0: i32) -> (i32, i32) {
    %c0_i32 = arith.constant 0 : i32
    %c0_i32_0 = arith.constant 0 : i32
    %c0_i32_1 = arith.constant 0 : i32
    return %c0_i32, %c0_i32_0 : i32, i32
  }
  func.func @transform_6(%arg0: i32) -> (i32, i32) {
    %c0_i32 = arith.constant 0 : i32
    %c0_i32_0 = arith.constant 0 : i32
    %c0_i32_1 = arith.constant 0 : i32
    return %c0_i32, %c0_i32_0 : i32, i32
  }
  func.func @transform_7(%arg0: i32) -> (i32, i32, i32) {
    %c0_i32 = arith.constant 0 : i32
    %c0_i32_0 = arith.constant 0 : i32
    %c0_i32_1 = arith.constant 0 : i32
    return %arg0, %c0_i32, %c0_i32_0 : i32, i32, i32
  }
}

</mosaic_0001>

<llo_original>
// kernel: _lambda_.3
$region0: #{_lambda_.3}
  #allocation0 [shape = 'u32[]', space=smem, size = 0x4, offset = 0x4, fixed_abs, tag = 'smem constant byte address 0x4 - core index']
  #allocation1 [shape = 'u32[72,128]{1,0:T(1,128)}', space=vmem, size = 0x9000, scoped, tag = 'internal scratch']
  %s0 = inlined_call_operand.vmem [shape: f32[8,8,128], index: 0, kind: input, shape index: {}]
  %s1 = inlined_call_operand.vmem [shape: f32[8,8,128], index: 1, kind: input, shape index: {}]
  %s2 = inlined_call_operand.vmem [shape: f32[8,8,128], index: 2, kind: input, shape index: {}]
  %s3 = inlined_call_operand.vmem [shape: f32[128,128], index: 3, kind: input, shape index: {}]
  %s4 = inlined_call_operand.vmem [shape: f32[128,128], index: 4, kind: input, shape index: {}]
  %s5 = inlined_call_operand.vmem [shape: f32[128,128], index: 5, kind: input, shape index: {}]
  %s6 = inlined_call_operand.vmem [shape: f32[1,128], index: 6, kind: input, shape index: {}]
  %s7 = inlined_call_operand.vmem [shape: f32[8,8,128], index: 7, kind: output, shape index: {}]
  %s8 = sld [smem:[#allocation0]]
  $region38: #{_lambda_.3} parent=0
    _
  %s10 = ssub.s32 1, %s8
  %s11 = scalar_select 0, %s10, %s8
  // Predicated region
  $region2: #{_lambda_.3} parent=0 // pred_check
    _
  $region3: #{_lambda_.3} parent=0 // pred_check_branch
    %13 = sbr.rel (0) target = $region5
  $region4: #{_lambda_.3} parent=0 // pred_region
    _
  $region5: #{_lambda_.3} parent=0 // pred_fallthru
    _
  // Predicated region
  $region6: #{_lambda_.3} parent=0 // pred_check
    _
  $region7: #{_lambda_.3} parent=0 // pred_check_branch
    %15 = sbr.rel (0) target = $region9
  $region8: #{_lambda_.3} parent=0 // pred_region
    _
  $region9: #{_lambda_.3} parent=0 // pred_fallthru
    _
  // Predicated region
  $region10: #{_lambda_.3} parent=0 // pred_check
    _
  $region11: #{_lambda_.3} parent=0 // pred_check_branch
    %17 = sbr.rel (0) target = $region13
  $region12: #{_lambda_.3} parent=0 // pred_region
    _
  $region13: #{_lambda_.3} parent=0 // pred_fallthru
    _
  // Predicated region
  $region14: #{_lambda_.3} parent=0 // pred_check
    _
  $region15: #{_lambda_.3} parent=0 // pred_check_branch
    %19 = sbr.rel (0) target = $region17
  $region16: #{_lambda_.3} parent=0 // pred_region
    _
  $region17: #{_lambda_.3} parent=0 // pred_fallthru
    _
  // Predicated region
  $region18: #{_lambda_.3} parent=0 // pred_check
    _
  $region19: #{_lambda_.3} parent=0 // pred_check_branch
    %21 = sbr.rel (0) target = $region21
  $region20: #{_lambda_.3} parent=0 // pred_region
    _
  $region21: #{_lambda_.3} parent=0 // pred_fallthru
    _
  // Predicated region
  $region22: #{_lambda_.3} parent=0 // pred_check
    _
  $region23: #{_lambda_.3} parent=0 // pred_check_branch
    %23 = sbr.rel (0) target = $region25
  $region24: #{_lambda_.3} parent=0 // pred_region
    _
  $region25: #{_lambda_.3} parent=0 // pred_fallthru
    _
  // Predicated region
  $region26: #{_lambda_.3} parent=0 // pred_check
    _
  $region27: #{_lambda_.3} parent=0 // pred_check_branch
    %25 = sbr.rel (0) target = $region29
  $region28: #{_lambda_.3} parent=0 // pred_region
    _
  $region29: #{_lambda_.3} parent=0 // pred_fallthru
    _
  %v26 = vld [vmem:[%s0] sm:$0xff]
  %v27 = vld [vmem:[%s0 + $0x8] sm:$0xff]
  %v28 = vld [vmem:[%s0 + $0x10] sm:$0xff]
  %v29 = vld [vmem:[%s0 + $0x18] sm:$0xff]
  %v30 = vld [vmem:[%s0 + $0x20] sm:$0xff]
  %v31 = vld [vmem:[%s0 + $0x28] sm:$0xff]
  %v32 = vld [vmem:[%s0 + $0x30] sm:$0xff]
  %v33 = vld [vmem:[%s0 + $0x38] sm:$0xff]
  %v34 = vld [vmem:[%s1] sm:$0xff]
  %v35 = vld [vmem:[%s1 + $0x8] sm:$0xff]
  %v36 = vld [vmem:[%s1 + $0x10] sm:$0xff]
  %v37 = vld [vmem:[%s1 + $0x18] sm:$0xff]
  %v38 = vld [vmem:[%s1 + $0x20] sm:$0xff]
  %v39 = vld [vmem:[%s1 + $0x28] sm:$0xff]
  %v40 = vld [vmem:[%s1 + $0x30] sm:$0xff]
  %v41 = vld [vmem:[%s1 + $0x38] sm:$0xff]
  %v42 = vld [vmem:[%s2] sm:$0xff]
  %v43 = vld [vmem:[%s2 + $0x8] sm:$0xff]
  %v44 = vld [vmem:[%s2 + $0x10] sm:$0xff]
  %v45 = vld [vmem:[%s2 + $0x18] sm:$0xff]
  %v46 = vld [vmem:[%s2 + $0x20] sm:$0xff]
  %v47 = vld [vmem:[%s2 + $0x28] sm:$0xff]
  %v48 = vld [vmem:[%s2 + $0x30] sm:$0xff]
  %v49 = vld [vmem:[%s2 + $0x38] sm:$0xff]
  %v50 = vld [vmem:[%s3] sm:$0xff]
  %v51 = vld [vmem:[%s3 + $0x8] sm:$0xff]
  %v52 = vld [vmem:[%s3 + $0x10] sm:$0xff]
  %v53 = vld [vmem:[%s3 + $0x18] sm:$0xff]
  %v54 = vld [vmem:[%s3 + $0x20] sm:$0xff]
  %v55 = vld [vmem:[%s3 + $0x28] sm:$0xff]
  %v56 = vld [vmem:[%s3 + $0x30] sm:$0xff]
  %v57 = vld [vmem:[%s3 + $0x38] sm:$0xff]
  %v58 = vld [vmem:[%s3 + $0x40] sm:$0xff]
  %v59 = vld [vmem:[%s3 + $0x48] sm:$0xff]
  %v60 = vld [vmem:[%s3 + $0x50] sm:$0xff]
  %v61 = vld [vmem:[%s3 + $0x58] sm:$0xff]
  %v62 = vld [vmem:[%s3 + $0x60] sm:$0xff]
  %v63 = vld [vmem:[%s3 + $0x68] sm:$0xff]
  %v64 = vld [vmem:[%s3 + $0x70] sm:$0xff]
  %v65 = vld [vmem:[%s3 + $0x78] sm:$0xff]
  %66 = vmatpush.msra.mxu0 %v65
  %67 = vmatpush.msra.mxu0 %v64
  %68 = vmatpush.msra.mxu0 %v63
  %69 = vmatpush.msra.mxu0 %v62
  %70 = vmatpush.msra.mxu0 %v61
  %71 = vmatpush.msra.mxu0 %v60
  %72 = vmatpush.msra.mxu0 %v59
  %73 = vmatpush.msra.mxu0 %v58
  %74 = vmatpush.msra.mxu0 %v57
  %75 = vmatpush.msra.mxu0 %v56
  %76 = vmatpush.msra.mxu0 %v55
  %77 = vmatpush.msra.mxu0 %v54
  %78 = vmatpush.msra.mxu0 %v53
  %79 = vmatpush.msra.mxu0 %v52
  %80 = vmatpush.msra.mxu0 %v51
  %81 = vmatpush.msra.mxu0 %v50
  %82 = vmatmul.f32.gmra.mxu0 %v26
  %v83 = vpop.f32.mrf.mxu0
  %v84 = vadd.f32 0.0, %v83
  %85 = vmatmul.f32.gmra.mxu0 %v27
  %v86 = vpop.f32.mrf.mxu0
  %v87 = vadd.f32 0.0, %v86
  %88 = vmatmul.f32.gmra.mxu0 %v28
  %v89 = vpop.f32.mrf.mxu0
  %v90 = vadd.f32 0.0, %v89
  %91 = vmatmul.f32.gmra.mxu0 %v29
  %v92 = vpop.f32.mrf.mxu0
  %v93 = vadd.f32 0.0, %v92
  %94 = vmatmul.f32.gmra.mxu0 %v30
  %v95 = vpop.f32.mrf.mxu0
  %v96 = vadd.f32 0.0, %v95
  %97 = vmatmul.f32.gmra.mxu0 %v31
  %v98 = vpop.f32.mrf.mxu0
  %v99 = vadd.f32 0.0, %v98
  %100 = vmatmul.f32.gmra.mxu0 %v32
  %v101 = vpop.f32.mrf.mxu0
  %v102 = vadd.f32 0.0, %v101
  %103 = vmatmul.f32.gmra.mxu0 %v33
  %v104 = vpop.f32.mrf.mxu0
  %v105 = vadd.f32 0.0, %v104
  %106 = vdwg.mxu0
  %v107 = vadd.f32 %v42, %v84
  %v108 = vadd.f32 %v43, %v87
  %v109 = vadd.f32 %v44, %v90
  %v110 = vadd.f32 %v45, %v93
  %v111 = vadd.f32 %v46, %v96
  %v112 = vadd.f32 %v47, %v99
  %v113 = vadd.f32 %v48, %v102
  %v114 = vadd.f32 %v49, %v105
  %v115 = vld [vmem:[%s4] sm:$0xff]
  %v116 = vld [vmem:[%s4 + $0x8] sm:$0xff]
  %v117 = vld [vmem:[%s4 + $0x10] sm:$0xff]
  %v118 = vld [vmem:[%s4 + $0x18] sm:$0xff]
  %v119 = vld [vmem:[%s4 + $0x20] sm:$0xff]
  %v120 = vld [vmem:[%s4 + $0x28] sm:$0xff]
  %v121 = vld [vmem:[%s4 + $0x30] sm:$0xff]
  %v122 = vld [vmem:[%s4 + $0x38] sm:$0xff]
  %v123 = vld [vmem:[%s4 + $0x40] sm:$0xff]
  %v124 = vld [vmem:[%s4 + $0x48] sm:$0xff]
  %v125 = vld [vmem:[%s4 + $0x50] sm:$0xff]
  %v126 = vld [vmem:[%s4 + $0x58] sm:$0xff]
  %v127 = vld [vmem:[%s4 + $0x60] sm:$0xff]
  %v128 = vld [vmem:[%s4 + $0x68] sm:$0xff]
  %v129 = vld [vmem:[%s4 + $0x70] sm:$0xff]
  %v130 = vld [vmem:[%s4 + $0x78] sm:$0xff]
  %v131 = vld [vmem:[%s5] sm:$0xff]
  %v132 = vld [vmem:[%s5 + $0x8] sm:$0xff]
  %v133 = vld [vmem:[%s5 + $0x10] sm:$0xff]
  %v134 = vld [vmem:[%s5 + $0x18] sm:$0xff]
  %v135 = vld [vmem:[%s5 + $0x20] sm:$0xff]
  %v136 = vld [vmem:[%s5 + $0x28] sm:$0xff]
  %v137 = vld [vmem:[%s5 + $0x30] sm:$0xff]
  %v138 = vld [vmem:[%s5 + $0x38] sm:$0xff]
  %v139 = vld [vmem:[%s5 + $0x40] sm:$0xff]
  %v140 = vld [vmem:[%s5 + $0x48] sm:$0xff]
  %v141 = vld [vmem:[%s5 + $0x50] sm:$0xff]
  %v142 = vld [vmem:[%s5 + $0x58] sm:$0xff]
  %v143 = vld [vmem:[%s5 + $0x60] sm:$0xff]
  %v144 = vld [vmem:[%s5 + $0x68] sm:$0xff]
  %v145 = vld [vmem:[%s5 + $0x70] sm:$0xff]
  %v146 = vld [vmem:[%s5 + $0x78] sm:$0xff]
  %147 = vmatpush.msra.mxu0 %v146
  %148 = vmatpush.msra.mxu0 %v145
  %149 = vmatpush.msra.mxu0 %v144
  %150 = vmatpush.msra.mxu0 %v143
  %151 = vmatpush.msra.mxu0 %v142
  %152 = vmatpush.msra.mxu0 %v141
  %153 = vmatpush.msra.mxu0 %v140
  %154 = vmatpush.msra.mxu0 %v139
  %155 = vmatpush.msra.mxu0 %v138
  %156 = vmatpush.msra.mxu0 %v137
  %157 = vmatpush.msra.mxu0 %v136
  %158 = vmatpush.msra.mxu0 %v135
  %159 = vmatpush.msra.mxu0 %v134
  %160 = vmatpush.msra.mxu0 %v133
  %161 = vmatpush.msra.mxu0 %v132
  %162 = vmatpush.msra.mxu0 %v131
  %163 = vmatmul.f32.gmra.mxu0 %v107
  %v164 = vpop.f32.mrf.mxu0
  %v165 = vadd.f32 0.0, %v164
  %166 = vmatmul.f32.gmra.mxu0 %v108
  %v167 = vpop.f32.mrf.mxu0
  %v168 = vadd.f32 0.0, %v167
  %169 = vmatmul.f32.gmra.mxu0 %v109
  %v170 = vpop.f32.mrf.mxu0
  %v171 = vadd.f32 0.0, %v170
  %172 = vmatmul.f32.gmra.mxu0 %v110
  %v173 = vpop.f32.mrf.mxu0
  %v174 = vadd.f32 0.0, %v173
  %175 = vmatmul.f32.gmra.mxu0 %v111
  %v176 = vpop.f32.mrf.mxu0
  %v177 = vadd.f32 0.0, %v176
  %178 = vmatmul.f32.gmra.mxu0 %v112
  %v179 = vpop.f32.mrf.mxu0
  %v180 = vadd.f32 0.0, %v179
  %181 = vmatmul.f32.gmra.mxu0 %v113
  %v182 = vpop.f32.mrf.mxu0
  %v183 = vadd.f32 0.0, %v182
  %184 = vmatmul.f32.gmra.mxu0 %v114
  %v185 = vpop.f32.mrf.mxu0
  %v186 = vadd.f32 0.0, %v185
  %187 = vdwg.mxu0
  %188 = vmatpush.msra.mxu0 %v130
  %189 = vmatpush.msra.mxu0 %v129
  %190 = vmatpush.msra.mxu0 %v128
  %191 = vmatpush.msra.mxu0 %v127
  %192 = vmatpush.msra.mxu0 %v126
  %193 = vmatpush.msra.mxu0 %v125
  %194 = vmatpush.msra.mxu0 %v124
  %195 = vmatpush.msra.mxu0 %v123
  %196 = vmatpush.msra.mxu0 %v122
  %197 = vmatpush.msra.mxu0 %v121
  %198 = vmatpush.msra.mxu0 %v120
  %199 = vmatpush.msra.mxu0 %v119
  %200 = vmatpush.msra.mxu0 %v118
  %201 = vmatpush.msra.mxu0 %v117
  %202 = vmatpush.msra.mxu0 %v116
  %203 = vmatpush.msra.mxu0 %v115
  %204 = vmatmul.f32.gmra.mxu0 %v34
  %v205 = vpop.f32.mrf.mxu0
  %v206 = vadd.f32 %v165, %v205
  %207 = vmatmul.f32.gmra.mxu0 %v35
  %v208 = vpop.f32.mrf.mxu0
  %v209 = vadd.f32 %v168, %v208
  %210 = vmatmul.f32.gmra.mxu0 %v36
  %v211 = vpop.f32.mrf.mxu0
  %v212 = vadd.f32 %v171, %v211
  %213 = vmatmul.f32.gmra.mxu0 %v37
  %v214 = vpop.f32.mrf.mxu0
  %v215 = vadd.f32 %v174, %v214
  %216 = vmatmul.f32.gmra.mxu0 %v38
  %v217 = vpop.f32.mrf.mxu0
  %v218 = vadd.f32 %v177, %v217
  %219 = vmatmul.f32.gmra.mxu0 %v39
  %v220 = vpop.f32.mrf.mxu0
  %v221 = vadd.f32 %v180, %v220
  %222 = vmatmul.f32.gmra.mxu0 %v40
  %v223 = vpop.f32.mrf.mxu0
  %v224 = vadd.f32 %v183, %v223
  %225 = vmatmul.f32.gmra.mxu0 %v41
  %v226 = vpop.f32.mrf.mxu0
  %v227 = vadd.f32 %v186, %v226
  %228 = vdwg.mxu0
  %v229 = vld [vmem:[%s6] sm:$0x1]
  %v231 = vperm.slane %v229, 0
  %v233 = vadd.f32 %v206, %v231
  %v234 = vadd.f32 %v209, %v231
  %v235 = vadd.f32 %v212, %v231
  %v236 = vadd.f32 %v215, %v231
  %v237 = vadd.f32 %v218, %v231
  %v238 = vadd.f32 %v221, %v231
  %v239 = vadd.f32 %v224, %v231
  %v240 = vadd.f32 %v227, %v231
  %241 = vmax.xlane.f32.xlu0 %v233
  %v242 = vpop.xlane.xlu0 %241
  %243 = vmax.xlane.f32.xlu0 %v234
  %v244 = vpop.xlane.xlu0 %243
  %245 = vmax.xlane.f32.xlu0 %v235
  %v246 = vpop.xlane.xlu0 %245
  %247 = vmax.xlane.f32.xlu0 %v236
  %v248 = vpop.xlane.xlu0 %247
  %249 = vmax.xlane.f32.xlu0 %v237
  %v250 = vpop.xlane.xlu0 %249
  %251 = vmax.xlane.f32.xlu0 %v238
  %v252 = vpop.xlane.xlu0 %251
  %253 = vmax.xlane.f32.xlu0 %v239
  %v254 = vpop.xlane.xlu0 %253
  %255 = vmax.xlane.f32.xlu0 %v240
  %v256 = vpop.xlane.xlu0 %255
  %v257 = vsub.f32 %v233, %v242
  %v258 = vsub.f32 %v234, %v244
  %v259 = vsub.f32 %v235, %v246
  %v260 = vsub.f32 %v236, %v248
  %v261 = vsub.f32 %v237, %v250
  %v262 = vsub.f32 %v238, %v252
  %v263 = vsub.f32 %v239, %v254
  %v264 = vsub.f32 %v240, %v256
  %v265 = vmul.f32 %v257, 1.442695
  %v266 = vpow.pop %v265
  %v267 = vmul.f32 %v258, 1.442695
  %v268 = vpow.pop %v267
  %v269 = vmul.f32 %v259, 1.442695
  %v270 = vpow.pop %v269
  %v271 = vmul.f32 %v260, 1.442695
  %v272 = vpow.pop %v271
  %v273 = vmul.f32 %v261, 1.442695
  %v274 = vpow.pop %v273
  %v275 = vmul.f32 %v262, 1.442695
  %v276 = vpow.pop %v275
  %v277 = vmul.f32 %v263, 1.442695
  %v278 = vpow.pop %v277
  %v279 = vmul.f32 %v264, 1.442695
  %v280 = vpow.pop %v279
  %281 = vadd.xlane.f32.xlu0 %v266
  %v282 = vpop.xlane.xlu0 %281
  %283 = vadd.xlane.f32.xlu0 %v268
  %v284 = vpop.xlane.xlu0 %283
  %285 = vadd.xlane.f32.xlu0 %v270
  %v286 = vpop.xlane.xlu0 %285
  %287 = vadd.xlane.f32.xlu0 %v272
  %v288 = vpop.xlane.xlu0 %287
  %289 = vadd.xlane.f32.xlu0 %v274
  %v290 = vpop.xlane.xlu0 %289
  %291 = vadd.xlane.f32.xlu0 %v276
  %v292 = vpop.xlane.xlu0 %291
  %293 = vadd.xlane.f32.xlu0 %v278
  %v294 = vpop.xlane.xlu0 %293
  %295 = vadd.xlane.f32.xlu0 %v280
  %v296 = vpop.xlane.xlu0 %295
  %v297 = vlog2.pop %v282
  %v298 = vmul.f32 %v297, 0.6931472
  %v299 = vlog2.pop %v284
  %v300 = vmul.f32 %v299, 0.6931472
  %v301 = vlog2.pop %v286
  %v302 = vmul.f32 %v301, 0.6931472
  %v303 = vlog2.pop %v288
  %v304 = vmul.f32 %v303, 0.6931472
  %v305 = vlog2.pop %v290
  %v306 = vmul.f32 %v305, 0.6931472
  %v307 = vlog2.pop %v292
  %v308 = vmul.f32 %v307, 0.6931472
  %v309 = vlog2.pop %v294
  %v310 = vmul.f32 %v309, 0.6931472
  %v311 = vlog2.pop %v296
  %v312 = vmul.f32 %v311, 0.6931472
  %v313 = vsub.f32 %v257, %v298
  %v314 = vsub.f32 %v258, %v300
  %v315 = vsub.f32 %v259, %v302
  %v316 = vsub.f32 %v260, %v304
  %v317 = vsub.f32 %v261, %v306
  %v318 = vsub.f32 %v262, %v308
  %v319 = vsub.f32 %v263, %v310
  %v320 = vsub.f32 %v264, %v312
  %321 = vst [vmem:[%s7] sm:$0xff] %v313
  %322 = vst [vmem:[%s7 + $0x8] sm:$0xff] %v314
  %323 = vst [vmem:[%s7 + $0x10] sm:$0xff] %v315
  %324 = vst [vmem:[%s7 + $0x18] sm:$0xff] %v316
  %325 = vst [vmem:[%s7 + $0x20] sm:$0xff] %v317
  %326 = vst [vmem:[%s7 + $0x28] sm:$0xff] %v318
  %327 = vst [vmem:[%s7 + $0x30] sm:$0xff] %v319
  %328 = vst [vmem:[%s7 + $0x38] sm:$0xff] %v320
  // Predicated region
  $region30: #{_lambda_.3} parent=0 // pred_check
    _
  $region31: #{_lambda_.3} parent=0 // pred_check_branch
    %330 = sbr.rel (0) target = $region33
  $region32: #{_lambda_.3} parent=0 // pred_region
    _
  $region33: #{_lambda_.3} parent=0 // pred_fallthru
    _
  // Predicated region
  $region34: #{_lambda_.3} parent=0 // pred_check
    _
  $region35: #{_lambda_.3} parent=0 // pred_check_branch
    %332 = sbr.rel (0) target = $region37
  $region36: #{_lambda_.3} parent=0 // pred_region
    _
  $region37: #{_lambda_.3} parent=0 // pred_fallthru
    _

// kernel: _lambda_.2
$region0: #{_lambda_.2}
  #allocation0 [shape = 'u32[]', space=smem, size = 0x4, offset = 0x4, fixed_abs, tag = 'smem constant byte address 0x4 - core index']
  #allocation1 [shape = 'u32[72,128]{1,0:T(1,128)}', space=vmem, size = 0x9000, scoped, tag = 'internal scratch']
  #allocation2 [shape = 'f32[8,128]{1,0:T(8,128)}', space=vmem, size = 0x1000, scoped, tag = 'scratch operand']
  %s0 = inlined_call_operand.vmem [shape: f32[8,8,128], index: 0, kind: input, shape index: {}]
  %s1 = inlined_call_operand.vmem [shape: f32[8,128], index: 1, kind: input, shape index: {}]
  %s2 = inlined_call_operand.vmem [shape: f32[128,128], index: 2, kind: input, shape index: {}]
  %s3 = inlined_call_operand.vmem [shape: f32[8,8,128], index: 3, kind: output, shape index: {0}]
  %s4 = inlined_call_operand.vmem [shape: f32[8,8,128], index: 4, kind: output, shape index: {1}]
  %5 = xla_tuple %s3, %s4
  %s6 = sld [smem:[#allocation0]]
  $region34: #{_lambda_.2} parent=0
    _
  %s8 = ssub.s32 1, %s6
  %s9 = scalar_select 0, %s8, %s6
  // Predicated region
  $region2: #{_lambda_.2} parent=0 // pred_check
    _
  $region3: #{_lambda_.2} parent=0 // pred_check_branch
    %11 = sbr.rel (0) target = $region5
  $region4: #{_lambda_.2} parent=0 // pred_region
    _
  $region5: #{_lambda_.2} parent=0 // pred_fallthru
    _
  // Predicated region
  $region6: #{_lambda_.2} parent=0 // pred_check
    _
  $region7: #{_lambda_.2} parent=0 // pred_check_branch
    %13 = sbr.rel (0) target = $region9
  $region8: #{_lambda_.2} parent=0 // pred_region
    _
  $region9: #{_lambda_.2} parent=0 // pred_fallthru
    _
  // Predicated region
  $region10: #{_lambda_.2} parent=0 // pred_check
    _
  $region11: #{_lambda_.2} parent=0 // pred_check_branch
    %15 = sbr.rel (0) target = $region13
  $region12: #{_lambda_.2} parent=0 // pred_region
    _
  $region13: #{_lambda_.2} parent=0 // pred_fallthru
    _
  %p16 = scmp.eq.s32.totalorder 0, 0
  // Predicated region
  $region14: #{_lambda_.2} parent=0 // pred_check
    %p17 = pneg %p16
  $region15: #{_lambda_.2} parent=0 // pred_check_branch
    %19 = sbr.rel (%p17) target = $region17
  $region16: #{_lambda_.2} parent=0 // pred_region
    %v20 = vld [vmem:[%s1] sm:$0xff]
    %21 = vst [vmem:[#allocation2] sm:$0xff] %v20
  $region17: #{_lambda_.2} parent=0 // pred_fallthru
    _
  %v22 = vld [vmem:[#allocation2] sm:$0xff]
  %23 = vst [vmem:[%s3] sm:$0xff] %v22
  %v24 = vld [vmem:[%s2] sm:$0xff]
  %v25 = vld [vmem:[%s2 + $0x8] sm:$0xff]
  %v26 = vld [vmem:[%s2 + $0x10] sm:$0xff]
  %v27 = vld [vmem:[%s2 + $0x18] sm:$0xff]
  %v28 = vld [vmem:[%s2 + $0x20] sm:$0xff]
  %v29 = vld [vmem:[%s2 + $0x28] sm:$0xff]
  %v30 = vld [vmem:[%s2 + $0x30] sm:$0xff]
  %v31 = vld [vmem:[%s2 + $0x38] sm:$0xff]
  %v32 = vld [vmem:[%s2 + $0x40] sm:$0xff]
  %v33 = vld [vmem:[%s2 + $0x48] sm:$0xff]
  %v34 = vld [vmem:[%s2 + $0x50] sm:$0xff]
  %v35 = vld [vmem:[%s2 + $0x58] sm:$0xff]
  %v36 = vld [vmem:[%s2 + $0x60] sm:$0xff]
  %v37 = vld [vmem:[%s2 + $0x68] sm:$0xff]
  %v38 = vld [vmem:[%s2 + $0x70] sm:$0xff]
  %v39 = vld [vmem:[%s2 + $0x78] sm:$0xff]
  %v40 = vld [vmem:[%s0] sm:$0xff]
  %41 = vmatpush.msra.mxu0 %v39
  %42 = vmatpush.msra.mxu0 %v38
  %43 = vmatpush.msra.mxu0 %v37
  %44 = vmatpush.msra.mxu0 %v36
  %45 = vmatpush.msra.mxu0 %v35
  %46 = vmatpush.msra.mxu0 %v34
  %47 = vmatpush.msra.mxu0 %v33
  %48 = vmatpush.msra.mxu0 %v32
  %49 = vmatpush.msra.mxu0 %v31
  %50 = vmatpush.msra.mxu0 %v30
  %51 = vmatpush.msra.mxu0 %v29
  %52 = vmatpush.msra.mxu0 %v28
  %53 = vmatpush.msra.mxu0 %v27
  %54 = vmatpush.msra.mxu0 %v26
  %55 = vmatpush.msra.mxu0 %v25
  %56 = vmatpush.msra.mxu0 %v24
  %57 = vmatmul.f32.gmra.mxu0 %v22
  %v58 = vpop.f32.mrf.mxu0
  %v59 = vadd.f32 %v40, %v58
  %60 = vdwg.mxu0
  %61 = vst [vmem:[%s4] sm:$0xff] %v59
  %s62 = scalar_lea.vmem %s3, 8
  %63 = vst [vmem:[%s62] sm:$0xff] %v59
  %v64 = vld [vmem:[%s2] sm:$0xff]
  %v65 = vld [vmem:[%s2 + $0x8] sm:$0xff]
  %v66 = vld [vmem:[%s2 + $0x10] sm:$0xff]
  %v67 = vld [vmem:[%s2 + $0x18] sm:$0xff]
  %v68 = vld [vmem:[%s2 + $0x20] sm:$0xff]
  %v69 = vld [vmem:[%s2 + $0x28] sm:$0xff]
  %v70 = vld [vmem:[%s2 + $0x30] sm:$0xff]
  %v71 = vld [vmem:[%s2 + $0x38] sm:$0xff]
  %v72 = vld [vmem:[%s2 + $0x40] sm:$0xff]
  %v73 = vld [vmem:[%s2 + $0x48] sm:$0xff]
  %v74 = vld [vmem:[%s2 + $0x50] sm:$0xff]
  %v75 = vld [vmem:[%s2 + $0x58] sm:$0xff]
  %v76 = vld [vmem:[%s2 + $0x60] sm:$0xff]
  %v77 = vld [vmem:[%s2 + $0x68] sm:$0xff]
  %v78 = vld [vmem:[%s2 + $0x70] sm:$0xff]
  %v79 = vld [vmem:[%s2 + $0x78] sm:$0xff]
  %s80 = scalar_lea.vmem %s0, 8
  %v81 = vld [vmem:[%s80] sm:$0xff]
  %82 = vmatpush.msra.mxu0 %v79
  %83 = vmatpush.msra.mxu0 %v78
  %84 = vmatpush.msra.mxu0 %v77
  %85 = vmatpush.msra.mxu0 %v76
  %86 = vmatpush.msra.mxu0 %v75
  %87 = vmatpush.msra.mxu0 %v74
  %88 = vmatpush.msra.mxu0 %v73
  %89 = vmatpush.msra.mxu0 %v72
  %90 = vmatpush.msra.mxu0 %v71
  %91 = vmatpush.msra.mxu0 %v70
  %92 = vmatpush.msra.mxu0 %v69
  %93 = vmatpush.msra.mxu0 %v68
  %94 = vmatpush.msra.mxu0 %v67
  %95 = vmatpush.msra.mxu0 %v66
  %96 = vmatpush.msra.mxu0 %v65
  %97 = vmatpush.msra.mxu0 %v64
  %98 = vmatmul.f32.gmra.mxu0 %v59
  %v99 = vpop.f32.mrf.mxu0
  %v100 = vadd.f32 %v81, %v99
  %101 = vdwg.mxu0
  %s102 = scalar_lea.vmem %s4, 8
  %103 = vst [vmem:[%s102] sm:$0xff] %v100
  %s104 = scalar_lea.vmem %s3, 16
  %105 = vst [vmem:[%s104] sm:$0xff] %v100
  %v106 = vld [vmem:[%s2] sm:$0xff]
  %v107 = vld [vmem:[%s2 + $0x8] sm:$0xff]
  %v108 = vld [vmem:[%s2 + $0x10] sm:$0xff]
  %v109 = vld [vmem:[%s2 + $0x18] sm:$0xff]
  %v110 = vld [vmem:[%s2 + $0x20] sm:$0xff]
  %v111 = vld [vmem:[%s2 + $0x28] sm:$0xff]
  %v112 = vld [vmem:[%s2 + $0x30] sm:$0xff]
  %v113 = vld [vmem:[%s2 + $0x38] sm:$0xff]
  %v114 = vld [vmem:[%s2 + $0x40] sm:$0xff]
  %v115 = vld [vmem:[%s2 + $0x48] sm:$0xff]
  %v116 = vld [vmem:[%s2 + $0x50] sm:$0xff]
  %v117 = vld [vmem:[%s2 + $0x58] sm:$0xff]
  %v118 = vld [vmem:[%s2 + $0x60] sm:$0xff]
  %v119 = vld [vmem:[%s2 + $0x68] sm:$0xff]
  %v120 = vld [vmem:[%s2 + $0x70] sm:$0xff]
  %v121 = vld [vmem:[%s2 + $0x78] sm:$0xff]
  %s122 = scalar_lea.vmem %s0, 16
  %v123 = vld [vmem:[%s122] sm:$0xff]
  %124 = vmatpush.msra.mxu0 %v121
  %125 = vmatpush.msra.mxu0 %v120
  %126 = vmatpush.msra.mxu0 %v119
  %127 = vmatpush.msra.mxu0 %v118
  %128 = vmatpush.msra.mxu0 %v117
  %129 = vmatpush.msra.mxu0 %v116
  %130 = vmatpush.msra.mxu0 %v115
  %131 = vmatpush.msra.mxu0 %v114
  %132 = vmatpush.msra.mxu0 %v113
  %133 = vmatpush.msra.mxu0 %v112
  %134 = vmatpush.msra.mxu0 %v111
  %135 = vmatpush.msra.mxu0 %v110
  %136 = vmatpush.msra.mxu0 %v109
  %137 = vmatpush.msra.mxu0 %v108
  %138 = vmatpush.msra.mxu0 %v107
  %139 = vmatpush.msra.mxu0 %v106
  %140 = vmatmul.f32.gmra.mxu0 %v100
  %v141 = vpop.f32.mrf.mxu0
  %v142 = vadd.f32 %v123, %v141
  %143 = vdwg.mxu0
  %s144 = scalar_lea.vmem %s4, 16
  %145 = vst [vmem:[%s144] sm:$0xff] %v142
  %s146 = scalar_lea.vmem %s3, 24
  %147 = vst [vmem:[%s146] sm:$0xff] %v142
  %v148 = vld [vmem:[%s2] sm:$0xff]
  %v149 = vld [vmem:[%s2 + $0x8] sm:$0xff]
  %v150 = vld [vmem:[%s2 + $0x10] sm:$0xff]
  %v151 = vld [vmem:[%s2 + $0x18] sm:$0xff]
  %v152 = vld [vmem:[%s2 + $0x20] sm:$0xff]
  %v153 = vld [vmem:[%s2 + $0x28] sm:$0xff]
  %v154 = vld [vmem:[%s2 + $0x30] sm:$0xff]
  %v155 = vld [vmem:[%s2 + $0x38] sm:$0xff]
  %v156 = vld [vmem:[%s2 + $0x40] sm:$0xff]
  %v157 = vld [vmem:[%s2 + $0x48] sm:$0xff]
  %v158 = vld [vmem:[%s2 + $0x50] sm:$0xff]
  %v159 = vld [vmem:[%s2 + $0x58] sm:$0xff]
  %v160 = vld [vmem:[%s2 + $0x60] sm:$0xff]
  %v161 = vld [vmem:[%s2 + $0x68] sm:$0xff]
  %v162 = vld [vmem:[%s2 + $0x70] sm:$0xff]
  %v163 = vld [vmem:[%s2 + $0x78] sm:$0xff]
  %s164 = scalar_lea.vmem %s0, 24
  %v165 = vld [vmem:[%s164] sm:$0xff]
  %166 = vmatpush.msra.mxu0 %v163
  %167 = vmatpush.msra.mxu0 %v162
  %168 = vmatpush.msra.mxu0 %v161
  %169 = vmatpush.msra.mxu0 %v160
  %170 = vmatpush.msra.mxu0 %v159
  %171 = vmatpush.msra.mxu0 %v158
  %172 = vmatpush.msra.mxu0 %v157
  %173 = vmatpush.msra.mxu0 %v156
  %174 = vmatpush.msra.mxu0 %v155
  %175 = vmatpush.msra.mxu0 %v154
  %176 = vmatpush.msra.mxu0 %v153
  %177 = vmatpush.msra.mxu0 %v152
  %178 = vmatpush.msra.mxu0 %v151
  %179 = vmatpush.msra.mxu0 %v150
  %180 = vmatpush.msra.mxu0 %v149
  %181 = vmatpush.msra.mxu0 %v148
  %182 = vmatmul.f32.gmra.mxu0 %v142
  %v183 = vpop.f32.mrf.mxu0
  %v184 = vadd.f32 %v165, %v183
  %185 = vdwg.mxu0
  %s186 = scalar_lea.vmem %s4, 24
  %187 = vst [vmem:[%s186] sm:$0xff] %v184
  %s188 = scalar_lea.vmem %s3, 32
  %189 = vst [vmem:[%s188] sm:$0xff] %v184
  %v190 = vld [vmem:[%s2] sm:$0xff]
  %v191 = vld [vmem:[%s2 + $0x8] sm:$0xff]
  %v192 = vld [vmem:[%s2 + $0x10] sm:$0xff]
  %v193 = vld [vmem:[%s2 + $0x18] sm:$0xff]
  %v194 = vld [vmem:[%s2 + $0x20] sm:$0xff]
  %v195 = vld [vmem:[%s2 + $0x28] sm:$0xff]
  %v196 = vld [vmem:[%s2 + $0x30] sm:$0xff]
  %v197 = vld [vmem:[%s2 + $0x38] sm:$0xff]
  %v198 = vld [vmem:[%s2 + $0x40] sm:$0xff]
  %v199 = vld [vmem:[%s2 + $0x48] sm:$0xff]
  %v200 = vld [vmem:[%s2 + $0x50] sm:$0xff]
  %v201 = vld [vmem:[%s2 + $0x58] sm:$0xff]
  %v202 = vld [vmem:[%s2 + $0x60] sm:$0xff]
  %v203 = vld [vmem:[%s2 + $0x68] sm:$0xff]
  %v204 = vld [vmem:[%s2 + $0x70] sm:$0xff]
  %v205 = vld [vmem:[%s2 + $0x78] sm:$0xff]
  %s206 = scalar_lea.vmem %s0, 32
  %v207 = vld [vmem:[%s206] sm:$0xff]
  %208 = vmatpush.msra.mxu0 %v205
  %209 = vmatpush.msra.mxu0 %v204
  %210 = vmatpush.msra.mxu0 %v203
  %211 = vmatpush.msra.mxu0 %v202
  %212 = vmatpush.msra.mxu0 %v201
  %213 = vmatpush.msra.mxu0 %v200
  %214 = vmatpush.msra.mxu0 %v199
  %215 = vmatpush.msra.mxu0 %v198
  %216 = vmatpush.msra.mxu0 %v197
  %217 = vmatpush.msra.mxu0 %v196
  %218 = vmatpush.msra.mxu0 %v195
  %219 = vmatpush.msra.mxu0 %v194
  %220 = vmatpush.msra.mxu0 %v193
  %221 = vmatpush.msra.mxu0 %v192
  %222 = vmatpush.msra.mxu0 %v191
  %223 = vmatpush.msra.mxu0 %v190
  %224 = vmatmul.f32.gmra.mxu0 %v184
  %v225 = vpop.f32.mrf.mxu0
  %v226 = vadd.f32 %v207, %v225
  %227 = vdwg.mxu0
  %s228 = scalar_lea.vmem %s4, 32
  %229 = vst [vmem:[%s228] sm:$0xff] %v226
  %s230 = scalar_lea.vmem %s3, 40
  %231 = vst [vmem:[%s230] sm:$0xff] %v226
  %v232 = vld [vmem:[%s2] sm:$0xff]
  %v233 = vld [vmem:[%s2 + $0x8] sm:$0xff]
  %v234 = vld [vmem:[%s2 + $0x10] sm:$0xff]
  %v235 = vld [vmem:[%s2 + $0x18] sm:$0xff]
  %v236 = vld [vmem:[%s2 + $0x20] sm:$0xff]
  %v237 = vld [vmem:[%s2 + $0x28] sm:$0xff]
  %v238 = vld [vmem:[%s2 + $0x30] sm:$0xff]
  %v239 = vld [vmem:[%s2 + $0x38] sm:$0xff]
  %v240 = vld [vmem:[%s2 + $0x40] sm:$0xff]
  %v241 = vld [vmem:[%s2 + $0x48] sm:$0xff]
  %v242 = vld [vmem:[%s2 + $0x50] sm:$0xff]
  %v243 = vld [vmem:[%s2 + $0x58] sm:$0xff]
  %v244 = vld [vmem:[%s2 + $0x60] sm:$0xff]
  %v245 = vld [vmem:[%s2 + $0x68] sm:$0xff]
  %v246 = vld [vmem:[%s2 + $0x70] sm:$0xff]
  %v247 = vld [vmem:[%s2 + $0x78] sm:$0xff]
  %s248 = scalar_lea.vmem %s0, 40
  %v249 = vld [vmem:[%s248] sm:$0xff]
  %250 = vmatpush.msra.mxu0 %v247
  %251 = vmatpush.msra.mxu0 %v246
  %252 = vmatpush.msra.mxu0 %v245
  %253 = vmatpush.msra.mxu0 %v244
  %254 = vmatpush.msra.mxu0 %v243
  %255 = vmatpush.msra.mxu0 %v242
  %256 = vmatpush.msra.mxu0 %v241
  %257 = vmatpush.msra.mxu0 %v240
  %258 = vmatpush.msra.mxu0 %v239
  %259 = vmatpush.msra.mxu0 %v238
  %260 = vmatpush.msra.mxu0 %v237
  %261 = vmatpush.msra.mxu0 %v236
  %262 = vmatpush.msra.mxu0 %v235
  %263 = vmatpush.msra.mxu0 %v234
  %264 = vmatpush.msra.mxu0 %v233
  %265 = vmatpush.msra.mxu0 %v232
  %266 = vmatmul.f32.gmra.mxu0 %v226
  %v267 = vpop.f32.mrf.mxu0
  %v268 = vadd.f32 %v249, %v267
  %269 = vdwg.mxu0
  %s270 = scalar_lea.vmem %s4, 40
  %271 = vst [vmem:[%s270] sm:$0xff] %v268
  %s272 = scalar_lea.vmem %s3, 48
  %273 = vst [vmem:[%s272] sm:$0xff] %v268
  %v274 = vld [vmem:[%s2] sm:$0xff]
  %v275 = vld [vmem:[%s2 + $0x8] sm:$0xff]
  %v276 = vld [vmem:[%s2 + $0x10] sm:$0xff]
  %v277 = vld [vmem:[%s2 + $0x18] sm:$0xff]
  %v278 = vld [vmem:[%s2 + $0x20] sm:$0xff]
  %v279 = vld [vmem:[%s2 + $0x28] sm:$0xff]
  %v280 = vld [vmem:[%s2 + $0x30] sm:$0xff]
  %v281 = vld [vmem:[%s2 + $0x38] sm:$0xff]
  %v282 = vld [vmem:[%s2 + $0x40] sm:$0xff]
  %v283 = vld [vmem:[%s2 + $0x48] sm:$0xff]
  %v284 = vld [vmem:[%s2 + $0x50] sm:$0xff]
  %v285 = vld [vmem:[%s2 + $0x58] sm:$0xff]
  %v286 = vld [vmem:[%s2 + $0x60] sm:$0xff]
  %v287 = vld [vmem:[%s2 + $0x68] sm:$0xff]
  %v288 = vld [vmem:[%s2 + $0x70] sm:$0xff]
  %v289 = vld [vmem:[%s2 + $0x78] sm:$0xff]
  %s290 = scalar_lea.vmem %s0, 48
  %v291 = vld [vmem:[%s290] sm:$0xff]
  %292 = vmatpush.msra.mxu0 %v289
  %293 = vmatpush.msra.mxu0 %v288
  %294 = vmatpush.msra.mxu0 %v287
  %295 = vmatpush.msra.mxu0 %v286
  %296 = vmatpush.msra.mxu0 %v285
  %297 = vmatpush.msra.mxu0 %v284
  %298 = vmatpush.msra.mxu0 %v283
  %299 = vmatpush.msra.mxu0 %v282
  %300 = vmatpush.msra.mxu0 %v281
  %301 = vmatpush.msra.mxu0 %v280
  %302 = vmatpush.msra.mxu0 %v279
  %303 = vmatpush.msra.mxu0 %v278
  %304 = vmatpush.msra.mxu0 %v277
  %305 = vmatpush.msra.mxu0 %v276
  %306 = vmatpush.msra.mxu0 %v275
  %307 = vmatpush.msra.mxu0 %v274
  %308 = vmatmul.f32.gmra.mxu0 %v268
  %v309 = vpop.f32.mrf.mxu0
  %v310 = vadd.f32 %v291, %v309
  %311 = vdwg.mxu0
  %s312 = scalar_lea.vmem %s4, 48
  %313 = vst [vmem:[%s312] sm:$0xff] %v310
  %s314 = scalar_lea.vmem %s3, 56
  %315 = vst [vmem:[%s314] sm:$0xff] %v310
  %v316 = vld [vmem:[%s2] sm:$0xff]
  %v317 = vld [vmem:[%s2 + $0x8] sm:$0xff]
  %v318 = vld [vmem:[%s2 + $0x10] sm:$0xff]
  %v319 = vld [vmem:[%s2 + $0x18] sm:$0xff]
  %v320 = vld [vmem:[%s2 + $0x20] sm:$0xff]
  %v321 = vld [vmem:[%s2 + $0x28] sm:$0xff]
  %v322 = vld [vmem:[%s2 + $0x30] sm:$0xff]
  %v323 = vld [vmem:[%s2 + $0x38] sm:$0xff]
  %v324 = vld [vmem:[%s2 + $0x40] sm:$0xff]
  %v325 = vld [vmem:[%s2 + $0x48] sm:$0xff]
  %v326 = vld [vmem:[%s2 + $0x50] sm:$0xff]
  %v327 = vld [vmem:[%s2 + $0x58] sm:$0xff]
  %v328 = vld [vmem:[%s2 + $0x60] sm:$0xff]
  %v329 = vld [vmem:[%s2 + $0x68] sm:$0xff]
  %v330 = vld [vmem:[%s2 + $0x70] sm:$0xff]
  %v331 = vld [vmem:[%s2 + $0x78] sm:$0xff]
  %s332 = scalar_lea.vmem %s0, 56
  %v333 = vld [vmem:[%s332] sm:$0xff]
  %334 = vmatpush.msra.mxu0 %v331
  %335 = vmatpush.msra.mxu0 %v330
  %336 = vmatpush.msra.mxu0 %v329
  %337 = vmatpush.msra.mxu0 %v328
  %338 = vmatpush.msra.mxu0 %v327
  %339 = vmatpush.msra.mxu0 %v326
  %340 = vmatpush.msra.mxu0 %v325
  %341 = vmatpush.msra.mxu0 %v324
  %342 = vmatpush.msra.mxu0 %v323
  %343 = vmatpush.msra.mxu0 %v322
  %344 = vmatpush.msra.mxu0 %v321
  %345 = vmatpush.msra.mxu0 %v320
  %346 = vmatpush.msra.mxu0 %v319
  %347 = vmatpush.msra.mxu0 %v318
  %348 = vmatpush.msra.mxu0 %v317
  %349 = vmatpush.msra.mxu0 %v316
  %350 = vmatmul.f32.gmra.mxu0 %v310
  %v351 = vpop.f32.mrf.mxu0
  %v352 = vadd.f32 %v333, %v351
  %353 = vdwg.mxu0
  %s354 = scalar_lea.vmem %s4, 56
  %355 = vst [vmem:[%s354] sm:$0xff] %v352
  %356 = vst [vmem:[#allocation2] sm:$0xff] %v352
  // Predicated region
  $region18: #{_lambda_.2} parent=0 // pred_check
    _
  $region19: #{_lambda_.2} parent=0 // pred_check_branch
    %358 = sbr.rel (0) target = $region21
  $region20: #{_lambda_.2} parent=0 // pred_region
    _
  $region21: #{_lambda_.2} parent=0 // pred_fallthru
    _
  // Predicated region
  $region22: #{_lambda_.2} parent=0 // pred_check
    _
  $region23: #{_lambda_.2} parent=0 // pred_check_branch
    %360 = sbr.rel (0) target = $region25
  $region24: #{_lambda_.2} parent=0 // pred_region
    _
  $region25: #{_lambda_.2} parent=0 // pred_fallthru
    _
  // Predicated region
  $region26: #{_lambda_.2} parent=0 // pred_check
    _
  $region27: #{_lambda_.2} parent=0 // pred_check_branch
    %362 = sbr.rel (0) target = $region29
  $region28: #{_lambda_.2} parent=0 // pred_region
    _
  $region29: #{_lambda_.2} parent=0 // pred_fallthru
    _
  // Predicated region
  $region30: #{_lambda_.2} parent=0 // pred_check
    _
  $region31: #{_lambda_.2} parent=0 // pred_check_branch
    %364 = sbr.rel (0) target = $region33
  $region32: #{_lambda_.2} parent=0 // pred_region
    _
  $region33: #{_lambda_.2} parent=0 // pred_fallthru
    _

</llo_original>
